<compile_context>
chip_gen: v6e
topology: v6e:2x2x1
jax: 0.10.0
libtpu: 0.0.40
codegen_flags: <defaults>
</compile_context>

<pallas_src>
import jax
import jax.numpy as jnp
from jax.experimental import pallas as pl
from jax.experimental.pallas import tpu as pltpu


def _round_up(x, m):
    return ((x + m - 1) // m) * m


def _choose_tiles(n_rows, d, itemsize, *, vmem_budget_bytes, max_rows):
    """Pick (tn, td) so 3 streams x 2 buffers of (tn, td) fit the VMEM budget."""
    # Row alignment matches packed sublane tiling: 8 for f32, 16 for bf16, ...
    row_align = max(8, 32 // itemsize)
    rows_a = _round_up(max(n_rows, 1), row_align)

    per_elem = 3 * 2 * itemsize              # x0 + eta + out, double-buffered

    td = d                                    # lane-dense: full width if it fits
    tn = vmem_budget_bytes // (per_elem * max(td, 1))
    if tn < row_align:
        # Very wide images: also tile the lane dim (multiples of 128).
        tn = row_align
        td = (vmem_budget_bytes // (per_elem * tn * 128)) * 128
        td = max(128, min(td, _round_up(d, 128)))

    tn = max(row_align, min((tn // row_align) * row_align, max_rows, rows_a))

    # Keep >= 2 row-blocks when the batch allows (feeds both v7x TensorCores).
    if rows_a >= 2 * row_align and pl.cdiv(rows_a, tn) < 2:
        tn = max(row_align, ((rows_a // 2) // row_align) * row_align)
    return tn, td


def _ddpm_forward_kernel(s_ref, x0_ref, eta_ref, out_ref):
    # s_ref: (TN, 2) f32 per-row scales: [:, 0] = sqrt(abar[t]), [:, 1] = sqrt(1-abar[t]).
    # x0_ref / eta_ref / out_ref: (TN, TD) tiles, lane-dense last dim.
    s = s_ref[...]
    s0 = s[:, 0:1]
    s1 = s[:, 1:2]
    x = x0_ref[...].astype(jnp.float32)
    e = eta_ref[...].astype(jnp.float32)
    out_ref[...] = (s0 * x + s1 * e).astype(out_ref.dtype)


def ddpm_forward(x0, t, eta, alpha_bars, *,
                 vmem_budget_bytes=20 << 20, max_block_rows=1024):
    """Pallas equivalent of DDPM.forward (eta passed explicitly)."""
    n, c, h, w = x0.shape
    d = c * h * w
    out_dtype = x0.dtype
    itemsize = jnp.dtype(out_dtype).itemsize

    # Tiny JAX-level schedule work: gather + sqrt, packed into one (n, 2) array.
    # (JAX gathers clamp OOB indices anyway; the clip just makes that explicit.)
    t = jnp.clip(t.astype(jnp.int32), 0, alpha_bars.shape[0] - 1)
    a_bar = alpha_bars.astype(jnp.float32)[t]                       # (n,)
    scales = jnp.stack([jnp.sqrt(a_bar), jnp.sqrt(1.0 - a_bar)], axis=-1)  # (n, 2)

    # Lane-dense 2D layout (d kept as-is; no lane padding).
    x2 = x0.reshape(n, d)
    e2 = eta.reshape(n, d)

    tn, td = _choose_tiles(n, d, itemsize,
                           vmem_budget_bytes=vmem_budget_bytes,
                           max_rows=max_block_rows)
    grid = (pl.cdiv(n, tn), pl.cdiv(d, td))   # ragged tail blocks are masked

    bytes_accessed = 3 * n * d * itemsize + n * 2 * 4

    out2 = pl.pallas_call(
        _ddpm_forward_kernel,
        out_shape=jax.ShapeDtypeStruct((n, d), out_dtype),
        grid_spec=pl.GridSpec(
            grid=grid,
            in_specs=[
                pl.BlockSpec((tn, 2), lambda i, j: (i, 0)),    # packed scales
                pl.BlockSpec((tn, td), lambda i, j: (i, j)),   # x0 (flattened)
                pl.BlockSpec((tn, td), lambda i, j: (i, j)),   # eta (flattened)
            ],
            out_specs=pl.BlockSpec((tn, td), lambda i, j: (i, j)),
        ),
        compiler_params=pltpu.CompilerParams(
            dimension_semantics=("parallel", "parallel"),
            vmem_limit_bytes=32 << 20,
        ),
        cost_estimate=pl.CostEstimate(
            flops=3 * n * d,
            transcendentals=0,
            bytes_accessed=bytes_accessed),
    )(scales, x2, e2)

    return out2.reshape(n, c, h, w)


def make_ddpm_schedule(n_steps=200, min_beta=1e-4, max_beta=0.02):
    """Deterministic parameter setup mirroring DDPM.__init__."""
    betas = jnp.linspace(min_beta, max_beta, n_steps, dtype=jnp.float32)
    alphas = 1.0 - betas
    alpha_bars = jnp.cumprod(alphas)                      # prod(alphas[:i+1])
    return betas, alphas, alpha_bars


# TODO(synk): DDPM.backward/generate/train_loop drive the external U-Net
# (`self.network`), the data loader and the optimizer; only the noising
# forward pass is a Pallas kernel here.


if __name__ == "__main__":
    n_steps = 200
    _, _, alpha_bars = make_ddpm_schedule(n_steps=n_steps)

    def reference(x0, t, eta):
        a_bar = alpha_bars[t].reshape(-1, 1, 1, 1)
        return jnp.sqrt(a_bar) * x0 + jnp.sqrt(1.0 - a_bar) * eta

    key = jax.random.PRNGKey(0)
    c, h, w = 1, 28, 28                                   # MNIST image_chw
    for n in (8, 12):                                     # 12 exercises the pad-free ragged tail
        k1, k2, k3, key = jax.random.split(key, 4)
        x0 = jax.random.normal(k1, (n, c, h, w), dtype=jnp.float32)
        eta = jax.random.normal(k2, (n, c, h, w), dtype=jnp.float32)
        t = jax.random.randint(k3, (n,), 0, n_steps)

        noisy = jax.block_until_ready(ddpm_forward(x0, t, eta, alpha_bars))

        ref = reference(x0, t, eta)
        assert noisy.shape == (n, c, h, w) and noisy.dtype == x0.dtype
        assert jnp.allclose(noisy, ref, atol=1e-5, rtol=1e-5)

    print("KERNEL_OK")
</pallas_src>

<mosaic_0001>
module attributes {stable_mosaic.version = 11 : i64} {
  func.func @_ddpm_forward_kernel(%arg0: i32, %arg1: i32, %arg2: memref<8x2xf32, #tpu.memory_space<vmem>>, %arg3: memref<8x784xf32, #tpu.memory_space<vmem>>, %arg4: memref<8x784xf32, #tpu.memory_space<vmem>>, %arg5: memref<8x784xf32, #tpu.memory_space<vmem>>) attributes {dimension_semantics = [#tpu.dimension_semantics<parallel>, #tpu.dimension_semantics<parallel>], iteration_bounds = array<i64: 1, 1>, scalar_prefetch = 0 : i64, scratch_operands = 0 : i64, tpu.core_type = #tpu.core_type<tc>, window_params = [{transform_indices = @transform_0, window_bounds = array<i64: 8, 2>}, {transform_indices = @transform_1, window_bounds = array<i64: 8, 784>}, {transform_indices = @transform_2, window_bounds = array<i64: 8, 784>}, {transform_indices = @transform_3, window_bounds = array<i64: 8, 784>}]} {
    %c0 = arith.constant 0 : index
    %c0_0 = arith.constant 0 : index
    %0 = vector.load %arg2[%c0, %c0_0] : memref<8x2xf32, #tpu.memory_space<vmem>>, vector<8x2xf32>
    %1 = vector.extract_strided_slice %0 {offsets = [0, 0], sizes = [8, 1], strides = [1, 1]} : vector<8x2xf32> to vector<8x1xf32>
    %2 = vector.extract_strided_slice %0 {offsets = [0, 1], sizes = [8, 1], strides = [1, 1]} : vector<8x2xf32> to vector<8x1xf32>
    %c0_1 = arith.constant 0 : index
    %c0_2 = arith.constant 0 : index
    %3 = vector.load %arg3[%c0_1, %c0_2] : memref<8x784xf32, #tpu.memory_space<vmem>>, vector<8x784xf32>
    %c0_3 = arith.constant 0 : index
    %c0_4 = arith.constant 0 : index
    %4 = vector.load %arg4[%c0_3, %c0_4] : memref<8x784xf32, #tpu.memory_space<vmem>>, vector<8x784xf32>
    %5 = vector.broadcast %1 : vector<8x1xf32> to vector<8x784xf32>
    %6 = arith.mulf %5, %3 : vector<8x784xf32>
    %7 = vector.broadcast %2 : vector<8x1xf32> to vector<8x784xf32>
    %8 = arith.mulf %7, %4 : vector<8x784xf32>
    %9 = arith.addf %6, %8 : vector<8x784xf32>
    %c0_5 = arith.constant 0 : index
    %c0_6 = arith.constant 0 : index
    %10 = vector.load %arg5[%c0_5, %c0_6] : memref<8x784xf32, #tpu.memory_space<vmem>>, vector<8x784xf32>
    tpu.vector_store %arg5[%c0_5, %c0_6], %9 {strides = array<i32>} : memref<8x784xf32, #tpu.memory_space<vmem>>, vector<8x784xf32>,
    return
  }
  func.func @transform_0(%arg0: i32, %arg1: i32) -> (i32, i32) {
    %c0_i32 = arith.constant 0 : i32
    %c0_i32_0 = arith.constant 0 : i32
    return %arg0, %c0_i32 : i32, i32
  }
  func.func @transform_1(%arg0: i32, %arg1: i32) -> (i32, i32) {
    %c0_i32 = arith.constant 0 : i32
    return %arg0, %arg1 : i32, i32
  }
  func.func @transform_2(%arg0: i32, %arg1: i32) -> (i32, i32) {
    %c0_i32 = arith.constant 0 : i32
    return %arg0, %arg1 : i32, i32
  }
  func.func @transform_3(%arg0: i32, %arg1: i32) -> (i32, i32) {
    %c0_i32 = arith.constant 0 : i32
    return %arg0, %arg1 : i32, i32
  }
}

</mosaic_0001>

<llo_original>
// kernel: tpu_custom_call.1
$region0: #{tpu_custom_call.1}
  #allocation0 [shape = 'u32[]', space=smem, size = 0x4, offset = 0x4, fixed_abs, tag = 'smem constant byte address 0x4 - core index']
  #allocation1 [shape = 'u32[144,128]{1,0:T(1,128)}', space=vmem, size = 0x12000, scoped, tag = 'internal scratch']
  %s0 = inlined_call_operand.vmem [shape: f32[8,2], index: 0, kind: input, shape index: {}]
  %s1 = inlined_call_operand.hbm [shape: f32[8,784], index: 1, kind: input, shape index: {}]
  %s2 = inlined_call_operand.hbm [shape: f32[8,784], index: 2, kind: input, shape index: {}]
  %s3 = inlined_call_operand.hbm [shape: f32[8,784], index: 3, kind: output, shape index: {}]
  %s4 = sld [smem:[#allocation0]]
  $region30: #{tpu_custom_call.1} parent=0
    _
  %s6 = ssub.s32 1, %s4
  %s7 = scalar_select 0, %s6, %s4
  $region1: #{tpu_custom_call.1} parent=0
    #allocation2 [shape = 'u8[28672]{0}', space=vmem, size = 0x7000, scoped, tag = 'input window, operand 1, single buffered']
    #allocation3 [shape = 's32[1]{0}', space=sflag, size = 0x4, scoped, tag = 'scoped memory for tpu_custom_call.1']
    #allocation4 [shape = 's32[1]{0}', space=sflag, size = 0x4, scoped, tag = 'scoped memory for tpu_custom_call.1']
    #allocation5 [shape = 'u8[28672]{0}', space=vmem, size = 0x7000, scoped, tag = 'input window, operand 2, single buffered']
    #allocation6 [shape = 's32[1]{0}', space=sflag, size = 0x4, scoped, tag = 'scoped memory for tpu_custom_call.1']
    #allocation7 [shape = 'u8[28672]{0}', space=vmem, size = 0x7000, scoped, tag = 'output window, operand 0, single buffered']
    %8 = vsyncpa [#allocation3], 0
    %9 = vsyncpa [#allocation6], 0
    %10 = vsyncpa [#allocation4], 0
    // Predicated region
    $region2: #{tpu_custom_call.1} parent=1 // pred_check
      _
    $region3: #{tpu_custom_call.1} parent=1 // pred_check_branch
      %12 = sbr.rel (0) target = $region5
    $region4: #{tpu_custom_call.1} parent=1 // pred_region
      _
    $region5: #{tpu_custom_call.1} parent=1 // pred_fallthru
      _
    // Predicated region
    $region6: #{tpu_custom_call.1} parent=1 // pred_check
      _
    $region7: #{tpu_custom_call.1} parent=1 // pred_check_branch
      %14 = sbr.rel (0) target = $region9
    $region8: #{tpu_custom_call.1} parent=1 // pred_region
      %s16 = ssub.s32 896, 896
      %17 = vsyncadd [#allocation3], %s16
      %s19 = sshll.u32 [#allocation2], 4
      %s20 = int_to_ptr.vmem [resolvable:$true] %s19
      %22 = dma.hbm_to_vmem [thread:$0]  %s1, 896, %s20, [#allocation3]
    $region9: #{tpu_custom_call.1} parent=1 // pred_fallthru
      _
    // Predicated region
    $region10: #{tpu_custom_call.1} parent=1 // pred_check
      _
    $region11: #{tpu_custom_call.1} parent=1 // pred_check_branch
      %24 = sbr.rel (0) target = $region13
    $region12: #{tpu_custom_call.1} parent=1 // pred_region
      %s26 = ssub.s32 896, 896
      %27 = vsyncadd [#allocation6], %s26
      %s29 = sshll.u32 [#allocation5], 4
      %s30 = int_to_ptr.vmem [resolvable:$true] %s29
      %32 = dma.hbm_to_vmem [thread:$0]  %s2, 896, %s30, [#allocation6]
    $region13: #{tpu_custom_call.1} parent=1 // pred_fallthru
      _
    // Predicated region
    $region14: #{tpu_custom_call.1} parent=1 // pred_check
      _
    $region15: #{tpu_custom_call.1} parent=1 // pred_check_branch
      %34 = sbr.rel (0) target = $region17
    $region16: #{tpu_custom_call.1} parent=1 // pred_region
      %35 = dma.done [#allocation3], 896
    $region17: #{tpu_custom_call.1} parent=1 // pred_fallthru
      _
    // Predicated region
    $region18: #{tpu_custom_call.1} parent=1 // pred_check
      _
    $region19: #{tpu_custom_call.1} parent=1 // pred_check_branch
      %37 = sbr.rel (0) target = $region21
    $region20: #{tpu_custom_call.1} parent=1 // pred_region
      %38 = dma.done [#allocation6], 896
    $region21: #{tpu_custom_call.1} parent=1 // pred_fallthru
      _
    %v39 = vld [vmem:[%s0] sm:$0xff]
    %v40 = vld [vmem:[#allocation2] sm:$0xff]
    %v41 = vld [vmem:[#allocation2 + $0x8] sm:$0xff]
    %v42 = vld [vmem:[#allocation2 + $0x10] sm:$0xff]
    %v43 = vld [vmem:[#allocation2 + $0x18] sm:$0xff]
    %v44 = vld [vmem:[#allocation2 + $0x20] sm:$0xff]
    %v45 = vld [vmem:[#allocation2 + $0x28] sm:$0xff]
    %v46 = vld [vmem:[#allocation2 + $0x30] sm:$0xff]
    %v47 = vld [vmem:[#allocation5] sm:$0xff]
    %v48 = vld [vmem:[#allocation5 + $0x8] sm:$0xff]
    %v49 = vld [vmem:[#allocation5 + $0x10] sm:$0xff]
    %v50 = vld [vmem:[#allocation5 + $0x18] sm:$0xff]
    %v51 = vld [vmem:[#allocation5 + $0x20] sm:$0xff]
    %v52 = vld [vmem:[#allocation5 + $0x28] sm:$0xff]
    %v53 = vld [vmem:[#allocation5 + $0x30] sm:$0xff]
    %55 = vset.pattern.permute.xlu0 0
    %56 = vperm.xlu0 %55, %v39
    %v57 = vpop.permute.xlu0 %56
    %v59 = vmul.f32 %v57, %v40
    %v60 = vmul.f32 %v57, %v41
    %v61 = vmul.f32 %v57, %v42
    %v62 = vmul.f32 %v57, %v43
    %v63 = vmul.f32 %v57, %v44
    %v64 = vmul.f32 %v57, %v45
    %v65 = vmul.f32 %v57, %v46
    %66 = vset.pattern.permute.xlu0 1
    %67 = vperm.xlu0 %66, %v39
    %v68 = vpop.permute.xlu0 %67
    %v70 = vmul.f32 %v68, %v47
    %v71 = vmul.f32 %v68, %v48
    %v72 = vmul.f32 %v68, %v49
    %v73 = vmul.f32 %v68, %v50
    %v74 = vmul.f32 %v68, %v51
    %v75 = vmul.f32 %v68, %v52
    %v76 = vmul.f32 %v68, %v53
    %v77 = vadd.f32 %v59, %v70
    %v78 = vadd.f32 %v60, %v71
    %v79 = vadd.f32 %v61, %v72
    %v80 = vadd.f32 %v62, %v73
    %v81 = vadd.f32 %v63, %v74
    %v82 = vadd.f32 %v64, %v75
    %v83 = vadd.f32 %v65, %v76
    %84 = vst [vmem:[#allocation7] sm:$0xff] %v77
    %85 = vst [vmem:[#allocation7 + $0x8] sm:$0xff] %v78
    %86 = vst [vmem:[#allocation7 + $0x10] sm:$0xff] %v79
    %87 = vst [vmem:[#allocation7 + $0x18] sm:$0xff] %v80
    %88 = vst [vmem:[#allocation7 + $0x20] sm:$0xff] %v81
    %89 = vst [vmem:[#allocation7 + $0x28] sm:$0xff] %v82
    %vm90 = vcmask 130048
    %91 = vst.msk [vmem:[#allocation7 + $0x30] sm:$0xff] %vm90, %v83
    // Predicated region
    $region22: #{tpu_custom_call.1} parent=1 // pred_check
      _
    $region23: #{tpu_custom_call.1} parent=1 // pred_check_branch
      %93 = sbr.rel (0) target = $region25
    $region24: #{tpu_custom_call.1} parent=1 // pred_region
      %s95 = ssub.s32 896, 896
      %96 = vsyncadd [#allocation4], %s95
      %s98 = sshll.u32 [#allocation7], 4
      %s99 = int_to_ptr.vmem [resolvable:$true] %s98
      %101 = dma.vmem_to_hbm [thread:$0]  %s99, 896, %s3, [#allocation4]
    $region25: #{tpu_custom_call.1} parent=1 // pred_fallthru
      _
    // Predicated region
    $region26: #{tpu_custom_call.1} parent=1 // pred_check
      _
    $region27: #{tpu_custom_call.1} parent=1 // pred_check_branch
      %103 = sbr.rel (0) target = $region29
    $region28: #{tpu_custom_call.1} parent=1 // pred_region
      %104 = dma.done [#allocation4], 896
    $region29: #{tpu_custom_call.1} parent=1 // pred_fallthru
      _
    %105 = vsyncpa [#allocation3], 1
    %106 = vsyncpa [#allocation6], 1
    %107 = vsyncpa [#allocation4], 1

</llo_original>
